<compile_context>
chip_gen: v6e
topology: v6e:2x2x1
jax: 0.10.0
libtpu: 0.0.40
codegen_flags: <defaults>
</compile_context>

<pallas_src>
import functools
import math

import jax
import jax.numpy as jnp
from jax.experimental import pallas as pl
from jax.experimental.pallas import tpu as pltpu

LANE = 128


def _round_up(x, m):
    return ((x + m - 1) // m) * m


def _gcn_kernel(*refs, aggregate_first, use_bias):
    if use_bias:
        x_ref, adj_ref, w_ref, b_ref, o_ref, acc_ref = refs
    else:
        x_ref, adj_ref, w_ref, o_ref, acc_ref = refs
        b_ref = None

    k = pl.program_id(2)

    @pl.when(k == 0)
    def _init():
        acc_ref[...] = jnp.zeros_like(acc_ref)

    adj_blk = adj_ref[...]    # (tile_n, tile_k)
    x_blk = x_ref[...]        # (tile_k, Fin)

    if aggregate_first:
        # acc += adj_tile @ x_tile  (contract against the narrow Fin; project later)
        acc_ref[...] += jnp.dot(adj_blk, x_blk, preferred_element_type=jnp.float32)
    else:
        # support = x_tile @ W, then aggregate.
        support = jnp.dot(x_blk, w_ref[...], preferred_element_type=jnp.float32)
        acc_ref[...] += jnp.dot(adj_blk, support.astype(adj_blk.dtype),
                                preferred_element_type=jnp.float32)

    @pl.when(k == pl.num_programs(2) - 1)
    def _finalize():
        if aggregate_first:
            out = jnp.dot(acc_ref[...].astype(w_ref.dtype), w_ref[...],
                          preferred_element_type=jnp.float32)
        else:
            out = acc_ref[...]
        if use_bias:
            out = out + b_ref[...]
        o_ref[...] = out.astype(o_ref.dtype)


def graph_convolution(x, adj, weight, bias=None, *,
                      row_tile=256, k_tile=256, mxu_dtype=None):
    """x: [B, N, Fin], adj: [B, N, N], weight: [Fin, Fout], bias: [Fout] or None."""
    B, N, Fin = x.shape
    Fin_w, Fout = weight.shape
    assert Fin_w == Fin, "weight shape mismatch"
    assert adj.shape == (B, N, N), "adj shape mismatch"
    out_dtype = x.dtype
    use_bias = bias is not None

    # ---- Lane-dense output: pad Fout up to a multiple of 128 lanes. ----
    Fout_p = max(_round_up(Fout, LANE), LANE)
    if Fout_p != Fout:
        weight = jnp.pad(weight, ((0, 0), (0, Fout_p - Fout)))
        if use_bias:
            bias = jnp.pad(bias, (0, Fout_p - Fout))

    # ---- Node-row tiling and contraction tiling (pad N only when tiled). ----
    tile_n = N if N <= row_tile else row_tile       # rows of adj / output rows
    tile_k = N if N <= k_tile else k_tile           # cols of adj / rows of x
    N_rows = _round_up(N, tile_n)
    N_cols = _round_up(N, tile_k)
    if N_rows != N or N_cols != N:
        adj = jnp.pad(adj, ((0, 0), (0, N_rows - N), (0, N_cols - N)))
    if N_cols != N:
        x = jnp.pad(x, ((0, 0), (0, N_cols - N), (0, 0)))

    # Optional low-precision MXU inputs (keep f32 accumulation inside kernel).
    if mxu_dtype is not None:
        x = x.astype(mxu_dtype)
        adj = adj.astype(mxu_dtype)
        weight = weight.astype(mxu_dtype)

    # Contract adj against whichever feature width is narrower.
    aggregate_first = Fout_p > Fin

    grid = (B, N_rows // tile_n, N_cols // tile_k)

    in_specs = [
        pl.BlockSpec((pl.Squeezed(), tile_k, Fin), lambda b, i, k: (b, k, 0)),
        pl.BlockSpec((pl.Squeezed(), tile_n, tile_k), lambda b, i, k: (b, i, k)),
        pl.BlockSpec((Fin, Fout_p), lambda b, i, k: (0, 0)),
    ]
    inputs = [x, adj, weight]
    if use_bias:
        in_specs.append(pl.BlockSpec((1, Fout_p), lambda b, i, k: (0, 0)))
        inputs.append(bias.reshape(1, Fout_p).astype(jnp.float32))

    acc_cols = Fin if aggregate_first else Fout_p
    scratch_shapes = [pltpu.VMEM((tile_n, acc_cols), jnp.float32)]

    # Advisory cost estimate for XLA scheduling.
    agg_width = Fin if aggregate_first else Fout_p
    flops = int(2 * B * N_rows * N_cols * agg_width + 2 * B * N_rows * Fin * Fout_p)
    bytes_accessed = int(
        x.size * x.dtype.itemsize
        + adj.size * adj.dtype.itemsize
        + weight.size * weight.dtype.itemsize
        + B * N_rows * Fout_p * jnp.dtype(out_dtype).itemsize
    )

    # VMEM budget: double-buffered tiles + accumulator, with headroom.
    # Capped at 32 MiB so it is safe on v7x (64 MiB physical) as well as v5e/v6e.
    itemsize = jnp.dtype(x.dtype).itemsize
    resident = (2 * (tile_n * tile_k + tile_k * Fin + Fin * Fout_p
                     + tile_n * Fout_p + Fout_p) * itemsize
                + tile_n * acc_cols * 4)
    vmem_limit = int(min(max(4 * resident, 16 << 20), 32 << 20))

    kernel = functools.partial(_gcn_kernel,
                               aggregate_first=aggregate_first,
                               use_bias=use_bias)

    out_p = pl.pallas_call(
        kernel,
        out_shape=jax.ShapeDtypeStruct((B, N_rows, Fout_p), out_dtype),
        grid_spec=pltpu.PrefetchScalarGridSpec(
            num_scalar_prefetch=0,
            grid=grid,
            in_specs=in_specs,
            out_specs=pl.BlockSpec((pl.Squeezed(), tile_n, Fout_p),
                                   lambda b, i, k: (b, i, 0)),
            scratch_shapes=scratch_shapes,
        ),
        compiler_params=pltpu.CompilerParams(
            dimension_semantics=("parallel", "parallel", "arbitrary"),
            vmem_limit_bytes=vmem_limit,
        ),
        cost_estimate=pl.CostEstimate(flops=flops, transcendentals=0,
                                      bytes_accessed=bytes_accessed),
    )(*inputs)

    # Strip node / feature padding added for tiling & lane density.
    return out_p[:, :N, :Fout]


def reference(x, adj, weight, bias):
    support = jnp.matmul(x, weight)
    out = jnp.matmul(adj, support)
    return out if bias is None else out + bias


def _make_inputs(key, B, N, Fin, Fout):
    k_x, k_adj, k_w, k_b = jax.random.split(key, 4)
    x = jax.random.normal(k_x, (B, N, Fin), dtype=jnp.float32)
    # Symmetric row-normalized adjacency (typical GCN input).
    a = jax.random.uniform(k_adj, (B, N, N), dtype=jnp.float32)
    a = 0.5 * (a + jnp.swapaxes(a, -1, -2)) + jnp.eye(N)[None]
    adj = a / jnp.sum(a, axis=-1, keepdims=True)
    # reset_parameters(): uniform(-stdv, stdv) with stdv = 1/sqrt(out_features).
    stdv = 1.0 / math.sqrt(Fout)
    weight = jax.random.uniform(k_w, (Fin, Fout), minval=-stdv, maxval=stdv,
                                dtype=jnp.float32)
    bias = jax.random.uniform(k_b, (Fout,), minval=-stdv, maxval=stdv,
                              dtype=jnp.float32)
    return x, adj, weight, bias


if __name__ == "__main__":
    key = jax.random.PRNGKey(0)
    k1, k2 = jax.random.split(key)

    # Case 1: module-consistent small shapes (aggregate-first path, with bias).
    B, N, Fin, Fout = 2, 8, 32, 32
    x, adj, w, b = _make_inputs(k1, B, N, Fin, Fout)
    out = jax.block_until_ready(graph_convolution(x, adj, w, b))
    ref = reference(x, adj, w, b)
    assert out.shape == (B, N, Fout)
    assert jnp.allclose(out, ref, atol=1e-4, rtol=1e-4), "mismatch (bias case)"

    # Case 1b: bias=None path (bias add compiled out).
    out_nb = jax.block_until_ready(graph_convolution(x, adj, w, None))
    ref_nb = reference(x, adj, w, None)
    assert jnp.allclose(out_nb, ref_nb, atol=1e-4, rtol=1e-4), "mismatch (no-bias case)"

    # Case 2: wide Fin exercises the project-first path.
    B2, N2, Fin2, Fout2 = 2, 8, 128, 32
    x2, adj2, w2, b2 = _make_inputs(k2, B2, N2, Fin2, Fout2)
    out2 = jax.block_until_ready(graph_convolution(x2, adj2, w2, b2))
    ref2 = reference(x2, adj2, w2, b2)
    assert jnp.allclose(out2, ref2, atol=1e-4, rtol=1e-4), "mismatch (project-first case)"

    print("KERNEL_OK")
</pallas_src>

<mosaic_0001>
module attributes {stable_mosaic.version = 11 : i64} {
  func.func @_gcn_kernel(%arg0: i32, %arg1: i32, %arg2: i32, %arg3: memref<1x8x32xf32, #tpu.memory_space<vmem>>, %arg4: memref<1x8x8xf32, #tpu.memory_space<vmem>>, %arg5: memref<32x128xf32, #tpu.memory_space<vmem>>, %arg6: memref<1x128xf32, #tpu.memory_space<vmem>>, %arg7: memref<1x8x128xf32, #tpu.memory_space<vmem>>, %arg8: memref<8x32xf32, #tpu.memory_space<vmem>>) attributes {dimension_semantics = [#tpu.dimension_semantics<parallel>, #tpu.dimension_semantics<parallel>, #tpu.dimension_semantics<arbitrary>], iteration_bounds = array<i64: 2, 1, 1>, scalar_prefetch = 0 : i64, scratch_operands = 1 : i64, tpu.core_type = #tpu.core_type<tc>, window_params = [{transform_indices = @transform_0, window_bounds = array<i64: 1, 8, 32>}, {transform_indices = @transform_1, window_bounds = array<i64: 1, 8, 8>}, {pipeline_mode = #tpu.pipeline_mode<synchronous>, transform_indices = @transform_2, window_bounds = array<i64: 32, 128>}, {pipeline_mode = #tpu.pipeline_mode<synchronous>, transform_indices = @transform_3, window_bounds = array<i64: 1, 128>}, {transform_indices = @transform_4, window_bounds = array<i64: 1, 8, 128>}]} {
    %c0_i32 = arith.constant 0 : i32
    %0 = arith.cmpi eq, %arg2, %c0_i32 : i32
    %1 = arith.extui %0 : i1 to i32
    %c0_i32_0 = arith.constant 0 : i32
    %2 = arith.cmpi ne, %1, %c0_i32_0 : i32
    scf.if %2 {
      %cst_12 = arith.constant 0.000000e+00 : f32
      %14 = vector.broadcast %cst_12 : f32 to vector<8x32xf32>
      %c0_13 = arith.constant 0 : index
      %c0_14 = arith.constant 0 : index
      %15 = vector.load %arg8[%c0_13, %c0_14] : memref<8x32xf32, #tpu.memory_space<vmem>>, vector<8x32xf32>
      tpu.vector_store %arg8[%c0_13, %c0_14], %14 {strides = array<i32>} : memref<8x32xf32, #tpu.memory_space<vmem>>, vector<8x32xf32>,
    } else {
    }
    %c0 = arith.constant 0 : index
    %c0_1 = arith.constant 0 : index
    %c0_2 = arith.constant 0 : index
    %3 = vector.load %arg4[%c0, %c0_1, %c0_2] : memref<1x8x8xf32, #tpu.memory_space<vmem>>, vector<1x8x8xf32>
    %4 = vector.shape_cast %3 : vector<1x8x8xf32> to vector<8x8xf32>
    %c0_3 = arith.constant 0 : index
    %c0_4 = arith.constant 0 : index
    %c0_5 = arith.constant 0 : index
    %5 = vector.load %arg3[%c0_3, %c0_4, %c0_5] : memref<1x8x32xf32, #tpu.memory_space<vmem>>, vector<1x8x32xf32>
    %6 = vector.shape_cast %5 : vector<1x8x32xf32> to vector<8x32xf32>
    %c0_6 = arith.constant 0 : index
    %c0_7 = arith.constant 0 : index
    %7 = vector.load %arg8[%c0_6, %c0_7] : memref<8x32xf32, #tpu.memory_space<vmem>>, vector<8x32xf32>
    %cst = arith.constant dense<0.000000e+00> : vector<8x32xf32>
    %8 = tpu.matmul %4, %6, %cst {dimension_numbers = #tpu.dot_dimension_numbers<[1], [0], [0], [1], [0, 0, 1, 1], [], []>} : vector<8x8xf32>, vector<8x32xf32>, vector<8x32xf32> -> vector<8x32xf32>
    %9 = arith.addf %7, %8 : vector<8x32xf32>
    %c0_8 = arith.constant 0 : index
    %c0_9 = arith.constant 0 : index
    %10 = vector.load %arg8[%c0_8, %c0_9] : memref<8x32xf32, #tpu.memory_space<vmem>>, vector<8x32xf32>
    tpu.vector_store %arg8[%c0_8, %c0_9], %9 {strides = array<i32>} : memref<8x32xf32, #tpu.memory_space<vmem>>, vector<8x32xf32>,
    %c0_i32_10 = arith.constant 0 : i32
    %11 = arith.cmpi eq, %arg2, %c0_i32_10 : i32
    %12 = arith.extui %11 : i1 to i32
    %c0_i32_11 = arith.constant 0 : i32
    %13 = arith.cmpi ne, %12, %c0_i32_11 : i32
    scf.if %13 {
      %c0_12 = arith.constant 0 : index
      %c0_13 = arith.constant 0 : index
      %14 = vector.load %arg8[%c0_12, %c0_13] : memref<8x32xf32, #tpu.memory_space<vmem>>, vector<8x32xf32>
      %c0_14 = arith.constant 0 : index
      %c0_15 = arith.constant 0 : index
      %15 = vector.load %arg5[%c0_14, %c0_15] : memref<32x128xf32, #tpu.memory_space<vmem>>, vector<32x128xf32>
      %cst_16 = arith.constant dense<0.000000e+00> : vector<8x128xf32>
      %16 = tpu.matmul %14, %15, %cst_16 {dimension_numbers = #tpu.dot_dimension_numbers<[1], [0], [0], [1], [0, 0, 1, 1], [], []>} : vector<8x32xf32>, vector<32x128xf32>, vector<8x128xf32> -> vector<8x128xf32>
      %c0_17 = arith.constant 0 : index
      %c0_18 = arith.constant 0 : index
      %17 = vector.load %arg6[%c0_17, %c0_18] : memref<1x128xf32, #tpu.memory_space<vmem>>, vector<1x128xf32>
      %18 = vector.broadcast %17 : vector<1x128xf32> to vector<8x128xf32>
      %19 = arith.addf %16, %18 : vector<8x128xf32>
      %c0_19 = arith.constant 0 : index
      %c0_20 = arith.constant 0 : index
      %c0_21 = arith.constant 0 : index
      %20 = vector.load %arg7[%c0_19, %c0_20, %c0_21] : memref<1x8x128xf32, #tpu.memory_space<vmem>>, vector<1x8x128xf32>
      %21 = vector.shape_cast %20 : vector<1x8x128xf32> to vector<8x128xf32>
      %22 = vector.shape_cast %19 : vector<8x128xf32> to vector<1x8x128xf32>
      tpu.vector_store %arg7[%c0_19, %c0_20, %c0_21], %22 {strides = array<i32>} : memref<1x8x128xf32, #tpu.memory_space<vmem>>, vector<1x8x128xf32>,
    } else {
    }
    return
  }
  func.func @transform_0(%arg0: i32, %arg1: i32, %arg2: i32) -> (i32, i32, i32) {
    %c0_i32 = arith.constant 0 : i32
    %c0_i32_0 = arith.constant 0 : i32
    return %arg0, %arg2, %c0_i32 : i32, i32, i32
  }
  func.func @transform_1(%arg0: i32, %arg1: i32, %arg2: i32) -> (i32, i32, i32) {
    %c0_i32 = arith.constant 0 : i32
    return %arg0, %arg1, %arg2 : i32, i32, i32
  }
  func.func @transform_2(%arg0: i32, %arg1: i32, %arg2: i32) -> (i32, i32) {
    %c0_i32 = arith.constant 0 : i32
    %c0_i32_0 = arith.constant 0 : i32
    %c0_i32_1 = arith.constant 0 : i32
    return %c0_i32, %c0_i32_0 : i32, i32
  }
  func.func @transform_3(%arg0: i32, %arg1: i32, %arg2: i32) -> (i32, i32) {
    %c0_i32 = arith.constant 0 : i32
    %c0_i32_0 = arith.constant 0 : i32
    %c0_i32_1 = arith.constant 0 : i32
    return %c0_i32, %c0_i32_0 : i32, i32
  }
  func.func @transform_4(%arg0: i32, %arg1: i32, %arg2: i32) -> (i32, i32, i32) {
    %c0_i32 = arith.constant 0 : i32
    %c0_i32_0 = arith.constant 0 : i32
    return %arg0, %arg1, %c0_i32 : i32, i32, i32
  }
}

</mosaic_0001>

<llo_original>
// kernel: tpu_custom_call.1
$region0: #{tpu_custom_call.1}
  #allocation0 [shape = 'u32[]', space=smem, size = 0x4, offset = 0x4, fixed_abs, tag = 'smem constant byte address 0x4 - core index']
  #allocation1 [shape = 'u32[144,128]{1,0:T(1,128)}', space=vmem, size = 0x12000, scoped, tag = 'internal scratch']
  #allocation2 [shape = 'f32[8,32]{1,0:T(8,128)}', space=vmem, size = 0x1000, scoped, tag = 'scratch operand']
  %s0 = inlined_call_operand.hbm [shape: f32[2,8,32], index: 0, kind: input, shape index: {}]
  %s1 = inlined_call_operand.hbm [shape: f32[2,8,8], index: 1, kind: input, shape index: {}]
  %s2 = inlined_call_operand.hbm [shape: f32[32,128], index: 2, kind: input, shape index: {}]
  %s3 = inlined_call_operand.vmem [shape: f32[1,128], index: 3, kind: input, shape index: {}]
  %s4 = inlined_call_operand.hbm [shape: f32[2,8,128], index: 4, kind: output, shape index: {}]
  %s5 = sld [smem:[#allocation0]]
  $region69: #{tpu_custom_call.1} parent=0
    _
  %s7 = ssub.s32 1, %s5
  %s8 = scalar_select 0, %s7, %s5
  $region1: #{tpu_custom_call.1} parent=0
    #allocation3 [shape = 'u8[8192]{0}', space=vmem, size = 0x2000, scoped, tag = 'input window, operand 0']
    #allocation4 [shape = 's32[2]{0}', space=sflag, size = 0x8, scoped, tag = 'scoped memory for tpu_custom_call.1']
    #allocation5 [shape = 's32[2]{0}', space=sflag, size = 0x8, scoped, tag = 'scoped memory for tpu_custom_call.1']
    #allocation6 [shape = 'u8[8192]{0}', space=vmem, size = 0x2000, scoped, tag = 'input window, operand 1']
    #allocation7 [shape = 's32[2]{0}', space=sflag, size = 0x8, scoped, tag = 'scoped memory for tpu_custom_call.1']
    #allocation8 [shape = 'u8[16384]{0}', space=vmem, size = 0x4000, scoped, tag = 'input window, operand 2, single buffered']
    #allocation9 [shape = 'u8[8192]{0}', space=vmem, size = 0x2000, scoped, tag = 'output window, operand 0']
    %9 = vsyncpa [#allocation4], 0
    %s10 = scalar_lea.sflag [#allocation4], 1
    %11 = vsyncpa %s10, 0
    %12 = vsyncpa [#allocation7], 0
    %s13 = scalar_lea.sflag [#allocation7], 1
    %14 = vsyncpa %s13, 0
    %15 = vsyncpa [#allocation5], 0
    %s16 = scalar_lea.sflag [#allocation5], 1
    %17 = vsyncpa %s16, 0
    loop: start=0, step=1, limit=4
    $region2: #{tpu_custom_call.1} parent=1 // loop_pre_header
      _
    $region3: #{tpu_custom_call.1} parent=1 // loop_header
      %s19 = sphi 0, %s23
      %p20 = scmp.ge.s32.totalorder %s19, 4
      %s26 = sphi 0, %s45
      %s27 = sphi 0, %s41
      %s28 = sphi 0, %s37
      %s29 = sphi 0, %s26
      %s30 = sphi 0, %s27
      %s31 = sphi 0, %s28
      %s32 = sphi 0, %s29
      %s33 = sphi 0, %s30
      %s34 = sphi 0, %s31
      %s50 = sphi 0, %s52
      %s53 = sphi 0, %s50
      %s54 = sphi 0, %s53
      %s70 = sphi 0, %s54
      %s80 = sphi 0, %s82
      %s83 = sphi 0, %s80
      %s84 = sphi 0, %s83
      %s100 = sphi 0, %s84
      %s104 = sphi 0, %s104
      %s106 = sphi 0, %s104
      %s107 = sphi 0, %s106
      %s121 = sphi 0, %s107
      %s125 = sphi 0, %s125
      %s127 = sphi 0, %s125
      %s128 = sphi 0, %s127
      %s142 = sphi 0, %s128
      %s150 = sphi 0, %s152
      %s153 = sphi 0, %s150
      %s154 = sphi 0, %s153
      %s170 = sphi 0, %s154
    $region4: #{tpu_custom_call.1} parent=1 // loop_header_branch
      %22 = sbr.rel (%p20) target = $region8
    $region5: #{tpu_custom_call.1} parent=1 // loop_body
      %s24 = ssub.s32 %s19, 1
      %s25 = ssub.s32 %s19, 2
      %s35 = sadd.s32 1, %s28
      %p36 = scmp.ge.s32.totalorder %s35, 1
      %s37 = scalar_select %p36, 0, %s35
      %s38 = sadd.s32 1, %s27
      %s39 = scalar_select %p36, %s38, %s27
      %p40 = scmp.ge.s32.totalorder %s39, 1
      %s41 = scalar_select %p40, 0, %s39
      %s42 = sadd.s32 1, %s26
      %s43 = scalar_select %p40, %s42, %s26
      %p44 = scmp.ge.s32.totalorder %s43, 2
      %s45 = scalar_select %p44, 0, %s43
      %s46 = ssub.s32 %s26, %s45
      %s47 = ssub.s32 %s28, %s37
      %s48 = sor.u32 %s46, %s47
      %p49 = scmp.eq.s32.totalorder %s48, 0
      %s51 = sadd.s32 %s50, 1
      %s52 = scalar_select %p49, %s50, %s51
      %p55 = pneg %p49
      %p56 = scmp.eq.s32.totalorder %s19, 1
      %p57 = por %p55, %p56
      %p58 = scmp.ne.s32.totalorder %s50, %s53
      %p59 = scmp.eq.s32.totalorder %s19, 0
      %p60 = por %p58, %p59
      %p61 = scmp.ne.s32.totalorder %s50, %s53
      %p62 = scmp.eq.s32.totalorder %s24, 1
      %p63 = por %p61, %p62
      %p64 = scmp.ne.s32.totalorder %s53, %s54
      %p65 = scmp.eq.s32.totalorder %s24, 0
      %p66 = por %p64, %p65
      %p67 = scmp.ne.s32.totalorder %s53, %s54
      %p68 = scmp.eq.s32.totalorder %s25, 1
      %p69 = por %p67, %p68
      %p71 = scmp.ne.s32.totalorder %s54, %s70
      %p72 = scmp.eq.s32.totalorder %s25, 0
      %p73 = por %p71, %p72
      %s74 = ssub.s32 %s26, %s45
      %s75 = ssub.s32 %s27, %s41
      %s76 = sor.u32 %s74, %s75
      %s77 = ssub.s32 %s28, %s37
      %s78 = sor.u32 %s76, %s77
      %p79 = scmp.eq.s32.totalorder %s78, 0
      %s81 = sadd.s32 %s80, 1
      %s82 = scalar_select %p79, %s80, %s81
      %p85 = pneg %p79
      %p86 = scmp.eq.s32.totalorder %s19, 1
      %p87 = por %p85, %p86
      %p88 = scmp.ne.s32.totalorder %s80, %s83
      %p89 = scmp.eq.s32.totalorder %s19, 0
      %p90 = por %p88, %p89
      %p91 = scmp.ne.s32.totalorder %s80, %s83
      %p92 = scmp.eq.s32.totalorder %s24, 1
      %p93 = por %p91, %p92
      %p94 = scmp.ne.s32.totalorder %s83, %s84
      %p95 = scmp.eq.s32.totalorder %s24, 0
      %p96 = por %p94, %p95
      %p97 = scmp.ne.s32.totalorder %s83, %s84
      %p98 = scmp.eq.s32.totalorder %s25, 1
      %p99 = por %p97, %p98
      %p101 = scmp.ne.s32.totalorder %s84, %s100
      %p102 = scmp.eq.s32.totalorder %s25, 0
      %p103 = por %p101, %p102
      %s105 = sadd.s32 %s104, 1
      %p108 = scmp.eq.s32.totalorder %s19, 1
      %p109 = scmp.ne.s32.totalorder %s104, %s106
      %p110 = scmp.eq.s32.totalorder %s19, 0
      %p111 = por %p109, %p110
      %p112 = scmp.ne.s32.totalorder %s104, %s106
      %p113 = scmp.eq.s32.totalorder %s24, 1
      %p114 = por %p112, %p113
      %p115 = scmp.ne.s32.totalorder %s106, %s107
      %p116 = scmp.eq.s32.totalorder %s24, 0
      %p117 = por %p115, %p116
      %p118 = scmp.ne.s32.totalorder %s106, %s107
      %p119 = scmp.eq.s32.totalorder %s25, 1
      %p120 = por %p118, %p119
      %p122 = scmp.ne.s32.totalorder %s107, %s121
      %p123 = scmp.eq.s32.totalorder %s25, 0
      %p124 = por %p122, %p123
      %s126 = sadd.s32 %s125, 1
      %p129 = scmp.eq.s32.totalorder %s19, 1
      %p130 = scmp.ne.s32.totalorder %s125, %s127
      %p131 = scmp.eq.s32.totalorder %s19, 0
      %p132 = por %p130, %p131
      %p133 = scmp.ne.s32.totalorder %s125, %s127
      %p134 = scmp.eq.s32.totalorder %s24, 1
      %p135 = por %p133, %p134
      %p136 = scmp.ne.s32.totalorder %s127, %s128
      %p137 = scmp.eq.s32.totalorder %s24, 0
      %p138 = por %p136, %p137
      %p139 = scmp.ne.s32.totalorder %s127, %s128
      %p140 = scmp.eq.s32.totalorder %s25, 1
      %p141 = por %p139, %p140
      %p143 = scmp.ne.s32.totalorder %s128, %s142
      %p144 = scmp.eq.s32.totalorder %s25, 0
      %p145 = por %p143, %p144
      %s146 = ssub.s32 %s26, %s45
      %s147 = ssub.s32 %s27, %s41
      %s148 = sor.u32 %s146, %s147
      %p149 = scmp.eq.s32.totalorder %s148, 0
      %s151 = sadd.s32 %s150, 1
      %s152 = scalar_select %p149, %s150, %s151
      %p155 = pneg %p149
      %p156 = scmp.eq.s32.totalorder %s19, 1
      %p157 = por %p155, %p156
      %p158 = scmp.ne.s32.totalorder %s150, %s153
      %p159 = scmp.eq.s32.totalorder %s19, 0
      %p160 = por %p158, %p159
      %p161 = scmp.ne.s32.totalorder %s150, %s153
      %p162 = scmp.eq.s32.totalorder %s24, 1
      %p163 = por %p161, %p162
      %p164 = scmp.ne.s32.totalorder %s153, %s154
      %p165 = scmp.eq.s32.totalorder %s24, 0
      %p166 = por %p164, %p165
      %p167 = scmp.ne.s32.totalorder %s153, %s154
      %p168 = scmp.eq.s32.totalorder %s25, 1
      %p169 = por %p167, %p168
      %p171 = scmp.ne.s32.totalorder %s154, %s170
      %p172 = scmp.eq.s32.totalorder %s25, 0
      %p173 = por %p171, %p172
      %p174 = scmp.le.s32.totalorder 1, %s19
      %p175 = scmp.lt.s32.totalorder %s19, 3
      %p176 = pnand %p174, %p175
      %p177 = pneg %p176
      // Predicated region
      $region9: #{tpu_custom_call.1} parent=5 // pred_check
        _
      $region10: #{tpu_custom_call.1} parent=5 // pred_check_branch
        %179 = sbr.rel (%p176) target = $region12
      $region11: #{tpu_custom_call.1} parent=5 // pred_region
        %s180 = ssub.s32 %s19, 1
        // Predicated region
        $region13: #{tpu_custom_call.1} parent=11 // pred_check
          %p181 = pneg %p117
        $region14: #{tpu_custom_call.1} parent=11 // pred_check_branch
          %183 = sbr.rel (%p181) target = $region16
        $region15: #{tpu_custom_call.1} parent=11 // pred_region
          %s185 = ssub.s32 512, 512
          %186 = vsyncadd [#allocation7], %s185
          %s187 = sshll.u32 [#allocation8], 4
          %s188 = int_to_ptr.vmem [resolvable:$true] %s187
          %193 = dma.hbm_to_vmem [thread:$0]  %s2, 512, %s188, [#allocation7], 128, 128, 8
        $region16: #{tpu_custom_call.1} parent=11 // pred_fallthru
          _
        // Predicated region
        $region17: #{tpu_custom_call.1} parent=11 // pred_check
          %p194 = pneg %p138
        $region18: #{tpu_custom_call.1} parent=11 // pred_check_branch
          %196 = sbr.rel (%p194) target = $region20
        $region19: #{tpu_custom_call.1} parent=11 // pred_region
          _
        $region20: #{tpu_custom_call.1} parent=11 // pred_fallthru
          _
      $region12: #{tpu_custom_call.1} parent=5 // pred_fallthru
        _
      %p197 = scmp.lt.s32.totalorder %s19, 2
      // Predicated region
      $region21: #{tpu_custom_call.1} parent=5 // pred_check
        %p198 = pneg %p197
      $region22: #{tpu_custom_call.1} parent=5 // pred_check_branch
        %200 = sbr.rel (%p198) target = $region24
      $region23: #{tpu_custom_call.1} parent=5 // pred_region
        // Predicated region
        $region25: #{tpu_custom_call.1} parent=23 // pred_check
          %p201 = pneg %p60
        $region26: #{tpu_custom_call.1} parent=23 // pred_check_branch
          %203 = sbr.rel (%p201) target = $region28
        $region27: #{tpu_custom_call.1} parent=23 // pred_region
          %s204 = sand.u32 %s50, 1
          %s205 = scalar_lea.sflag [#allocation4], %s204
          %s206 = sand.u32 %s50, 1
          %s207 = smul.addr %s206, 8
          %s208 = scalar_lea.vmem [#allocation3], %s207
          %s210 = ssub.s32 128, 128
          %211 = vsyncadd %s205, %s210
          %s212 = sadd.s32 %s28, %s26
          %s213 = smul.addr %s212, 128
          %s214 = scalar_lea.hbm %s0, %s213
          %s216 = sshll.u32 %s208, 4
          %s217 = int_to_ptr.vmem [resolvable:$true] %s216
          %219 = dma.hbm_to_vmem [thread:$0]  %s214, 128, %s217, %s205
        $region28: #{tpu_custom_call.1} parent=23 // pred_fallthru
          _
        // Predicated region
        $region29: #{tpu_custom_call.1} parent=23 // pred_check
          %p220 = pneg %p90
        $region30: #{tpu_custom_call.1} parent=23 // pred_check_branch
          %222 = sbr.rel (%p220) target = $region32
        $region31: #{tpu_custom_call.1} parent=23 // pred_region
          %s223 = sand.u32 %s19, 1
          %s224 = scalar_lea.sflag [#allocation7], %s223
          %s225 = sand.u32 %s80, 1
          %s226 = smul.addr %s225, 8
          %s227 = scalar_lea.vmem [#allocation6], %s226
          %s229 = ssub.s32 128, 128
          %230 = vsyncadd %s224, %s229
          %s231 = sadd.s32 %s28, %s27
          %s232 = sadd.s32 %s231, %s26
          %s233 = smul.addr %s232, 128
          %s234 = scalar_lea.hbm %s1, %s233
          %s236 = sshll.u32 %s227, 4
          %s237 = int_to_ptr.vmem [resolvable:$true] %s236
          %239 = dma.hbm_to_vmem [thread:$0]  %s234, 128, %s237, %s224
        $region32: #{tpu_custom_call.1} parent=23 // pred_fallthru
          _
      $region24: #{tpu_custom_call.1} parent=5 // pred_fallthru
        _
      %p240 = scmp.le.s32.totalorder 1, %s19
      %p241 = scmp.lt.s32.totalorder %s19, 3
      %p242 = pnand %p240, %p241
      %p243 = pneg %p242
      // Predicated region
      $region33: #{tpu_custom_call.1} parent=5 // pred_check
        _
      $region34: #{tpu_custom_call.1} parent=5 // pred_check_branch
        %245 = sbr.rel (%p242) target = $region36
      $region35: #{tpu_custom_call.1} parent=5 // pred_region
        %s246 = ssub.s32 %s19, 1
        %s247 = sand.u32 %s53, 1
        %s248 = scalar_lea.sflag [#allocation4], %s247
        %s249 = sand.u32 %s53, 1
        %s250 = smul.addr %s249, 8
        %s251 = scalar_lea.vmem [#allocation3], %s250
        // Predicated region
        $region37: #{tpu_custom_call.1} parent=35 // pred_check
          %p252 = pneg %p66
        $region38: #{tpu_custom_call.1} parent=35 // pred_check_branch
          %254 = sbr.rel (%p252) target = $region40
        $region39: #{tpu_custom_call.1} parent=35 // pred_region
          %255 = dma.done %s248, 128
        $region40: #{tpu_custom_call.1} parent=35 // pred_fallthru
          _
        %s256 = sand.u32 %s24, 1
        %s257 = scalar_lea.sflag [#allocation7], %s256
        %s258 = sand.u32 %s83, 1
        %s259 = smul.addr %s258, 8
        %s260 = scalar_lea.vmem [#allocation6], %s259
        // Predicated region
        $region41: #{tpu_custom_call.1} parent=35 // pred_check
          %p261 = pneg %p96
        $region42: #{tpu_custom_call.1} parent=35 // pred_check_branch
          %263 = sbr.rel (%p261) target = $region44
        $region43: #{tpu_custom_call.1} parent=35 // pred_region
          %264 = dma.done %s257, 128
        $region44: #{tpu_custom_call.1} parent=35 // pred_fallthru
          _
        // Predicated region
        $region45: #{tpu_custom_call.1} parent=35 // pred_check
          %p265 = pneg %p117
        $region46: #{tpu_custom_call.1} parent=35 // pred_check_branch
          %267 = sbr.rel (%p265) target = $region48
        $region47: #{tpu_custom_call.1} parent=35 // pred_region
          %268 = dma.done [#allocation7], 512
        $region48: #{tpu_custom_call.1} parent=35 // pred_fallthru
          _
        %s269 = sand.u32 %s53, 1
        %s270 = scalar_lea.sflag [#allocation4], %s269
        %s271 = sand.u32 %s53, 1
        %s272 = smul.addr %s271, 8
        %s273 = scalar_lea.vmem [#allocation3], %s272
        %p274 = pneg %p66
        %p275 = pneg %p63
        %s276 = sand.u32 %s24, 1
        %s277 = scalar_lea.sflag [#allocation7], %s276
        %s278 = sand.u32 %s83, 1
        %s279 = smul.addr %s278, 8
        %s280 = scalar_lea.vmem [#allocation6], %s279
        %p281 = pneg %p96
        %p282 = pneg %p93
        %p283 = pneg %p117
        %p284 = pneg %p114
        %p285 = pneg %p138
        %p286 = pneg %p135
        %p287 = pneg %p166
        %p288 = pneg %p163
        %s289 = sand.u32 %s153, 1
        %s290 = scalar_lea.sflag [#allocation5], %s289
        %s291 = sand.u32 %s153, 1
        %s292 = smul.addr %s291, 8
        %s293 = scalar_lea.vmem [#allocation9], %s292
        %p294 = scmp.eq.s32.totalorder %s31, 0
        // Predicated region
        $region49: #{tpu_custom_call.1} parent=35 // pred_check
          %p295 = pneg %p294
        $region50: #{tpu_custom_call.1} parent=35 // pred_check_branch
          %297 = sbr.rel (%p295) target = $region52
        $region51: #{tpu_custom_call.1} parent=35 // pred_region
          %vm298 = vcmask 261120
          %299 = vst.msk [vmem:[#allocation2] sm:$0xff] %vm298, 0.0
        $region52: #{tpu_custom_call.1} parent=35 // pred_fallthru
          _
        %v300 = vld [vmem:[%s260] sm:$0xff]
        %v301 = vld [vmem:[%s251] sm:$0xff]
        %v302 = vld [vmem:[#allocation2] sm:$0xff]
        %vm303 = vcmask 64512
        %v305 = vsel %vm303, %v300, 0
        %307 = vmatprep.subr.mxu0 0.0
        %308 = vmatpush1.msra.mxu0 0.0
        %309 = vmatprep.subr.mxu0 0.0
        %310 = vmatpush1.msra.mxu0 0.0
        %311 = vmatprep.subr.mxu0 0.0
        %312 = vmatpush1.msra.mxu0 0.0
        %313 = vmatprep.subr.mxu0 0.0
        %314 = vmatpush1.msra.mxu0 0.0
        %315 = vmatprep.subr.mxu0 0.0
        %316 = vmatpush1.msra.mxu0 0.0
        %317 = vmatprep.subr.mxu0 0.0
        %318 = vmatpush1.msra.mxu0 0.0
        %319 = vmatprep.subr.mxu0 0.0
        %320 = vmatpush1.msra.mxu0 0.0
        %321 = vmatprep.subr.mxu0 0.0
        %322 = vmatpush1.msra.mxu0 0.0
        %323 = vmatprep.subr.mxu0 0.0
        %324 = vmatpush1.msra.mxu0 0.0
        %325 = vmatprep.subr.mxu0 0.0
        %326 = vmatpush1.msra.mxu0 0.0
        %327 = vmatprep.subr.mxu0 0.0
        %328 = vmatpush1.msra.mxu0 0.0
        %329 = vmatprep.subr.mxu0 0.0
        %330 = vmatpush1.msra.mxu0 0.0
        %331 = vmatprep.subr.mxu0 0.0
        %332 = vmatpush1.msra.mxu0 0.0
        %333 = vmatprep.subr.mxu0 0.0
        %334 = vmatpush1.msra.mxu0 0.0
        %335 = vmatprep.subr.mxu0 0.0
        %336 = vmatpush1.msra.mxu0 0.0
        %337 = vmatprep.subr.mxu0 0.0
        %338 = vmatpush1.msra.mxu0 %v301
        %339 = vmatprep.subr.mxu0 0.0
        %340 = vmatpush2.msra.mxu0 0.0
        %341 = vmatprep.subr.mxu0 0.0
        %342 = vmatpush2.msra.mxu0 0.0
        %343 = vmatprep.subr.mxu0 0.0
        %344 = vmatpush2.msra.mxu0 0.0
        %345 = vmatprep.subr.mxu0 0.0
        %346 = vmatpush2.msra.mxu0 0.0
        %347 = vmatprep.subr.mxu0 0.0
        %348 = vmatpush2.msra.mxu0 0.0
        %349 = vmatprep.subr.mxu0 0.0
        %350 = vmatpush2.msra.mxu0 0.0
        %351 = vmatprep.subr.mxu0 0.0
        %352 = vmatpush2.msra.mxu0 0.0
        %353 = vmatprep.subr.mxu0 0.0
        %354 = vmatpush2.msra.mxu0 0.0
        %355 = vmatprep.subr.mxu0 0.0
        %356 = vmatpush2.msra.mxu0 0.0
        %357 = vmatprep.subr.mxu0 0.0
        %358 = vmatpush2.msra.mxu0 0.0
        %359 = vmatprep.subr.mxu0 0.0
        %360 = vmatpush2.msra.mxu0 0.0
        %361 = vmatprep.subr.mxu0 0.0
        %362 = vmatpush2.msra.mxu0 0.0
        %363 = vmatprep.subr.mxu0 0.0
        %364 = vmatpush2.msra.mxu0 0.0
        %365 = vmatprep.subr.mxu0 0.0
        %366 = vmatpush2.msra.mxu0 0.0
        %367 = vmatprep.subr.mxu0 0.0
        %368 = vmatpush2.msra.mxu0 0.0
        %369 = vmatprep.subr.mxu0 0.0
        %370 = vmatpush2.msra.mxu0 0.0
        %371 = vmatprep.mubr.f32.mxu0 0.0
        %372 = vmatmul.mubr.f32.gmra.mxu0 %v305
        %v373 = vpop.f32.mrf.mxu0
        %v374 = vadd.f32 0.0, %v373
        %v375 = vpop.f32.mrf.mxu0
        %376 = vdwg.mxu0
        %v377 = vadd.f32 %v302, %v374
        %vm378 = vcmask 261120
        %379 = vst.msk [vmem:[#allocation2] sm:$0xff] %vm378, %v377
        // Predicated region
        $region53: #{tpu_custom_call.1} parent=35 // pred_check
          %p380 = pneg %p294
        $region54: #{tpu_custom_call.1} parent=35 // pred_check_branch
          %382 = sbr.rel (%p380) target = $region56
        $region55: #{tpu_custom_call.1} parent=35 // pred_region
          %v383 = vld [vmem:[#allocation2] sm:$0xff]
          %v384 = vld [vmem:[#allocation8] sm:$0xff]
          %v385 = vld [vmem:[#allocation8 + $0x8] sm:$0xff]
          %v386 = vld [vmem:[#allocation8 + $0x10] sm:$0xff]
          %v387 = vld [vmem:[#allocation8 + $0x18] sm:$0xff]
          %v388 = vld [vmem:[%s3] sm:$0x1]
          %v390 = vlaneseq
          %v391 = vshrl.u32 %v390, 7
          %v392 = vsub.s32 0, %v391
          %v393 = vrot.slane %v388, %v392
          %v396 = vsel %vm378, %v383, 0
          %398 = vmatprep.subr.mxu0 0.0
          %399 = vmatpush1.msra.mxu0 0.0
          %400 = vmatprep.subr.mxu0 0.0
          %401 = vmatpush1.msra.mxu0 0.0
          %402 = vmatprep.subr.mxu0 0.0
          %403 = vmatpush1.msra.mxu0 0.0
          %404 = vmatprep.subr.mxu0 0.0
          %405 = vmatpush1.msra.mxu0 0.0
          %406 = vmatprep.subr.mxu0 0.0
          %407 = vmatpush1.msra.mxu0 0.0
          %408 = vmatprep.subr.mxu0 0.0
          %409 = vmatpush1.msra.mxu0 0.0
          %410 = vmatprep.subr.mxu0 0.0
          %411 = vmatpush1.msra.mxu0 0.0
          %412 = vmatprep.subr.mxu0 0.0
          %413 = vmatpush1.msra.mxu0 0.0
          %414 = vmatprep.subr.mxu0 0.0
          %415 = vmatpush1.msra.mxu0 0.0
          %416 = vmatprep.subr.mxu0 0.0
          %417 = vmatpush1.msra.mxu0 0.0
          %418 = vmatprep.subr.mxu0 0.0
          %419 = vmatpush1.msra.mxu0 0.0
          %420 = vmatprep.subr.mxu0 0.0
          %421 = vmatpush1.msra.mxu0 0.0
          %422 = vmatprep.subr.mxu0 0.0
          %423 = vmatpush1.msra.mxu0 %v387
          %424 = vmatprep.subr.mxu0 0.0
          %425 = vmatpush1.msra.mxu0 %v386
          %426 = vmatprep.subr.mxu0 0.0
          %427 = vmatpush1.msra.mxu0 %v385
          %428 = vmatprep.subr.mxu0 0.0
          %429 = vmatpush1.msra.mxu0 %v384
          %430 = vmatprep.subr.mxu0 0.0
          %431 = vmatpush2.msra.mxu0 0.0
          %432 = vmatprep.subr.mxu0 0.0
          %433 = vmatpush2.msra.mxu0 0.0
          %434 = vmatprep.subr.mxu0 0.0
          %435 = vmatpush2.msra.mxu0 0.0
          %436 = vmatprep.subr.mxu0 0.0
          %437 = vmatpush2.msra.mxu0 0.0
          %438 = vmatprep.subr.mxu0 0.0
          %439 = vmatpush2.msra.mxu0 0.0
          %440 = vmatprep.subr.mxu0 0.0
          %441 = vmatpush2.msra.mxu0 0.0
          %442 = vmatprep.subr.mxu0 0.0
          %443 = vmatpush2.msra.mxu0 0.0
          %444 = vmatprep.subr.mxu0 0.0
          %445 = vmatpush2.msra.mxu0 0.0
          %446 = vmatprep.subr.mxu0 0.0
          %447 = vmatpush2.msra.mxu0 0.0
          %448 = vmatprep.subr.mxu0 0.0
          %449 = vmatpush2.msra.mxu0 0.0
          %450 = vmatprep.subr.mxu0 0.0
          %451 = vmatpush2.msra.mxu0 0.0
          %452 = vmatprep.subr.mxu0 0.0
          %453 = vmatpush2.msra.mxu0 0.0
          %454 = vmatprep.subr.mxu0 0.0
          %455 = vmatpush2.msra.mxu0 0.0
          %456 = vmatprep.subr.mxu0 0.0
          %457 = vmatpush2.msra.mxu0 0.0
          %458 = vmatprep.subr.mxu0 0.0
          %459 = vmatpush2.msra.mxu0 0.0
          %460 = vmatprep.subr.mxu0 0.0
          %461 = vmatpush2.msra.mxu0 0.0
          %462 = vmatprep.mubr.f32.mxu0 0.0
          %463 = vmatmul.mubr.f32.gmra.mxu0 %v396
          %v464 = vpop.f32.mrf.mxu0
          %v465 = vadd.f32 %v393, %v464
          %v466 = vpop.f32.mrf.mxu0
          %467 = vdwg.mxu0
          %468 = vst [vmem:[%s293] sm:$0xff] %v465
        $region56: #{tpu_custom_call.1} parent=35 // pred_fallthru
          _
        %s469 = sand.u32 %s153, 1
        %s470 = scalar_lea.sflag [#allocation5], %s469
        %s471 = sand.u32 %s153, 1
        %s472 = smul.addr %s471, 8
        %s473 = scalar_lea.vmem [#allocation9], %s472
        // Predicated region
        $region57: #{tpu_custom_call.1} parent=35 // pred_check
          %p474 = pneg %p163
        $region58: #{tpu_custom_call.1} parent=35 // pred_check_branch
          %476 = sbr.rel (%p474) target = $region60
        $region59: #{tpu_custom_call.1} parent=35 // pred_region
          %s478 = ssub.s32 128, 128
          %479 = vsyncadd %s470, %s478
          %s480 = sadd.s32 %s30, %s29
          %s481 = smul.addr %s480, 128
          %s482 = scalar_lea.hbm %s4, %s481
          %s484 = sshll.u32 %s473, 4
          %s485 = int_to_ptr.vmem [resolvable:$true] %s484
          %487 = dma.vmem_to_hbm [thread:$0]  %s485, 128, %s482, %s470
        $region60: #{tpu_custom_call.1} parent=35 // pred_fallthru
          _
      $region36: #{tpu_custom_call.1} parent=5 // pred_fallthru
        _
      %p488 = scmp.le.s32.totalorder 2, %s19
      // Predicated region
      $region61: #{tpu_custom_call.1} parent=5 // pred_check
        %p489 = pneg %p488
      $region62: #{tpu_custom_call.1} parent=5 // pred_check_branch
        %491 = sbr.rel (%p489) target = $region64
      $region63: #{tpu_custom_call.1} parent=5 // pred_region
        %s492 = ssub.s32 %s19, 2
        // Predicated region
        $region65: #{tpu_custom_call.1} parent=63 // pred_check
          %p493 = pneg %p169
        $region66: #{tpu_custom_call.1} parent=63 // pred_check_branch
          %495 = sbr.rel (%p493) target = $region68
        $region67: #{tpu_custom_call.1} parent=63 // pred_region
          %s496 = sand.u32 %s154, 1
          %s497 = scalar_lea.sflag [#allocation5], %s496
          %s498 = sand.u32 %s154, 1
          %s499 = smul.addr %s498, 8
          %s500 = scalar_lea.vmem [#allocation9], %s499
          %501 = dma.done %s497, 128
        $region68: #{tpu_custom_call.1} parent=63 // pred_fallthru
          _
      $region64: #{tpu_custom_call.1} parent=5 // pred_fallthru
        _
    $region6: #{tpu_custom_call.1} parent=1 // loop_footer
      %s23 = sadd.s32 1, %s19
    $region7: #{tpu_custom_call.1} parent=1 // loop_footer_branch
      %18 = sbr.rel target = $region3
    $region8: #{tpu_custom_call.1} parent=1 // loop_exit
      _
    %502 = vsyncpa [#allocation4], 1
    %s503 = scalar_lea.sflag [#allocation4], 1
    %504 = vsyncpa %s503, 1
    %505 = vsyncpa [#allocation7], 1
    %s506 = scalar_lea.sflag [#allocation7], 1
    %507 = vsyncpa %s506, 1
    %508 = vsyncpa [#allocation5], 1
    %s509 = scalar_lea.sflag [#allocation5], 1
    %510 = vsyncpa %s509, 1

</llo_original>
